<compile_context>
chip_gen: v7x
topology: tpu7x:2x2x1
jax: 0.10.0
libtpu: 0.0.40
codegen_flags: <defaults>
</compile_context>

<pallas_src>
import numpy as np
import jax
import jax.numpy as jnp
from jax.experimental import pallas as pl
from jax.experimental.pallas import tpu as pltpu


# ----------------------------- Pallas kernel --------------------------------

def _leaky_relu(v, slope):
    return jnp.where(v >= 0, v, slope * v)


def generator_kernel(x_ref, w_ref, vec_ref, o_ref):
    eps = 1e-5
    slope = 0.01
    H = 128

    # One (8, 128) f32 slab holding every per-channel vector.
    vec = vec_ref[...]
    b1, b2, b3, b4 = vec[0:1, :], vec[1:2, :], vec[2:3, :], vec[3:4, :]
    g2, be2, g3, be3 = vec[4:5, :], vec[5:6, :], vec[6:7, :], vec[7:8, :]

    # Static 128-aligned lane slices of the single (128, 896) bf16 weight slab.
    w1    = w_ref[:, 0:H]          # (128, 128)  padded map1 weight
    wperm = w_ref[:, H:4 * H]      # (128, 384)  haar @ perm[0..2], fused
    w2    = w_ref[:, 4 * H:5 * H]  # (128, 128)
    w3    = w_ref[:, 5 * H:6 * H]  # (128, 128)
    w4    = w_ref[:, 6 * H:7 * H]  # (128, 128)  padded map4 weight

    x = x_ref[...]                                                    # (B, 128) bf16

    # x = leaky_relu(map1(x))    (MXU in bf16, accumulate + elementwise in f32)
    h = jnp.dot(x, w1, preferred_element_type=jnp.float32) + b1
    h = _leaky_relu(h, slope)                                         # (B, H) f32

    # Fused: (x @ hd) @ perm[k] for k=0..2 as one (B,H)@(H,3H) matmul.
    y = jnp.dot(h.astype(jnp.bfloat16), wperm,
                preferred_element_type=jnp.float32)                   # (B, 3H) f32
    # MaxPool1d(3, stride=2) over the length-4 permutation axis: one window {0,1,2}.
    pooled = jnp.maximum(jnp.maximum(y[:, :H], y[:, H:2 * H]), y[:, 2 * H:3 * H])

    # batchnorm2 (training-mode batch stats per channel); the two reductions are
    # independent (E[x], E[x^2]) to avoid a serial mean->center->square->mean chain.
    # .sum(2) over the singleton pooled-length dim is a no-op, x0 == 0.
    m2 = jnp.mean(pooled, axis=0, keepdims=True)
    s2 = jnp.mean(pooled * pooled, axis=0, keepdims=True)
    v2 = jnp.maximum(s2 - m2 * m2, 0.0)                               # biased var
    bn2 = g2 * (pooled - m2) * jax.lax.rsqrt(v2 + eps) + be2

    # x = leaky_relu(map2(x))
    h = jnp.dot(bn2.astype(jnp.bfloat16), w2,
                preferred_element_type=jnp.float32) + b2
    h = _leaky_relu(h, slope)

    # x = batchnorm3(map3(x))
    h3 = jnp.dot(h.astype(jnp.bfloat16), w3,
                 preferred_element_type=jnp.float32) + b3
    m3 = jnp.mean(h3, axis=0, keepdims=True)
    s3 = jnp.mean(h3 * h3, axis=0, keepdims=True)
    v3 = jnp.maximum(s3 - m3 * m3, 0.0)
    bn3 = g3 * (h3 - m3) * jax.lax.rsqrt(v3 + eps) + be3

    # return leaky_relu(map4(leaky_relu(x)), 0.1)   (output padded to 128 lanes)
    z = _leaky_relu(bn3, slope)
    out = jnp.dot(z.astype(jnp.bfloat16), w4,
                  preferred_element_type=jnp.float32) + b4
    o_ref[...] = _leaky_relu(out, 0.1)


# ------------------------------ wrappers -------------------------------------

K_PAD = 128
OUT_PAD = 128


def generator_forward_batched(x, params, output_size):
    """N independent Generator forwards fused into one gridded pallas_call.

    x: (N, B, input_size) f32. BatchNorm statistics are computed per call
    (per grid step), exactly matching N separate PyTorch forward() calls.
    """
    w_slab, vec = params
    N, B, K = x.shape

    # Zero-pad the contraction dim to 128 lanes and cast to bf16 at the boundary.
    x_pad = jnp.zeros((N, B, K_PAD), jnp.bfloat16).at[:, :, :K].set(
        x.astype(jnp.bfloat16))

    grid_spec = pltpu.PrefetchScalarGridSpec(
        num_scalar_prefetch=0,
        grid=(N,),
        in_specs=[
            pl.BlockSpec((None, B, K_PAD), lambda n: (n, 0, 0)),   # per-call x
            pl.BlockSpec((128, 7 * 128), lambda n: (0, 0)),        # resident weights
            pl.BlockSpec((8, 128), lambda n: (0, 0)),              # resident vec slab
        ],
        out_specs=pl.BlockSpec((None, B, OUT_PAD), lambda n: (n, 0, 0)),
    )

    out = pl.pallas_call(
        generator_kernel,
        out_shape=jax.ShapeDtypeStruct((N, B, OUT_PAD), jnp.float32),
        grid_spec=grid_spec,
        compiler_params=pltpu.CompilerParams(
            dimension_semantics=("parallel",)),
    )(x_pad, w_slab, vec)
    return out[:, :, :output_size]


def generator_forward(x, params, output_size):
    """Single-call convenience wrapper: x (B, input_size) -> (B, output_size)."""
    return generator_forward_batched(x[None], params, output_size)[0]


# ------------------------- deterministic parameter setup --------------------

def haar_matrix(n):
    """Normalized Haar transform matrix of size n x n (n power of two)."""
    h = np.array([[1.0]], dtype=np.float64)
    while h.shape[0] < n:
        k = h.shape[0]
        top = np.kron(h, np.array([1.0, 1.0]))
        bot = np.kron(np.eye(k), np.array([1.0, -1.0]))
        h = np.vstack([top, bot]) / np.sqrt(2.0)
    return h.astype(np.float32)


def make_permute_tensor(hidden, permute_number, seed=0):
    """permuteTensor: stack of SignMatrix(H) @ PermuteMatrix(H), shape (P, H, H)."""
    rng = np.random.default_rng(seed)
    mats = []
    for _ in range(permute_number):
        perm = rng.permutation(hidden)
        pmat = np.eye(hidden, dtype=np.float32)[perm, :]          # torch.eye[perm, :]
        # Matches the torch module: (randn > 0.5)*2 - 1 (intentionally asymmetric).
        signs = ((rng.standard_normal(hidden) > 0.5).astype(np.float32) * 2.0 - 1.0)
        smat = np.diag(signs).astype(np.float32)
        mats.append((smat @ pmat)[None])
    return np.concatenate(mats, axis=0).astype(np.float32)


def linear_params(key, fan_in, fan_out):
    """PyTorch-style Linear init, weight returned pre-transposed to (in, out)."""
    kw, kb = jax.random.split(key)
    bound = 1.0 / np.sqrt(fan_in)
    w = jax.random.uniform(kw, (fan_in, fan_out), jnp.float32, -bound, bound)
    b = jax.random.uniform(kb, (1, fan_out), jnp.float32, -bound, bound)
    return w, b


def make_params(key, input_size, hidden_size, output_size):
    assert hidden_size == 128, "slab packing below assumes hidden_size == 128"
    H = hidden_size

    k1, k2, k3, k4 = jax.random.split(key, 4)
    w1, b1 = linear_params(k1, input_size, H)
    w2, b2 = linear_params(k2, H, H)
    w3, b3 = linear_params(k3, H, H)
    w4, b4 = linear_params(k4, H, output_size)

    # self.hd = haar_dict[log2(H)-1].t(); fold it into the first 3 permutations
    # (permutation 3 never reaches the output of MaxPool1d(3, stride=2) on length 4).
    hd = haar_matrix(H).T                                              # (H, H)
    perm = make_permute_tensor(H, permute_number=4, seed=0)            # (4, H, H)
    wperm = np.concatenate([hd @ perm[k] for k in range(3)], axis=1)   # (H, 3H)

    # BatchNorm affine params (PyTorch defaults: gamma=1, beta=0)
    g2 = jnp.ones((1, H), jnp.float32)
    be2 = jnp.zeros((1, H), jnp.float32)
    g3 = jnp.ones((1, H), jnp.float32)
    be3 = jnp.zeros((1, H), jnp.float32)

    # Zero-pad map1's K dim and map4's N dim to 128 lanes.
    w1p = jnp.zeros((K_PAD, H), jnp.float32).at[:input_size, :].set(w1)
    w4p = jnp.zeros((H, OUT_PAD), jnp.float32).at[:, :output_size].set(w4)
    b4p = jnp.zeros((1, OUT_PAD), jnp.float32).at[:, :output_size].set(b4)

    # One (128, 896) bf16 slab holding every weight matrix -> a single weight DMA.
    w_slab = jnp.concatenate(
        [w1p, jnp.asarray(wperm, jnp.float32), w2, w3, w4p], axis=1
    ).astype(jnp.bfloat16)                                             # (128, 7*128)

    # One (8, 128) f32 slab holding all per-channel vectors (1 DMA instead of 8).
    vec = jnp.concatenate([b1, b2, b3, b4p, g2, be2, g3, be3], axis=0)

    return (w_slab, vec)


# ----------------------------------- main ------------------------------------

if __name__ == "__main__":
    input_size = 32
    hidden_size = 128
    output_size = 64
    batch = 8
    n_calls = 4   # independent Generator invocations fused into one gridded call

    key = jax.random.PRNGKey(0)
    kx, kp = jax.random.split(key)

    params = make_params(kp, input_size, hidden_size, output_size)

    # Gridded path: n_calls independent batches in one pallas_call.
    xb = jax.random.normal(kx, (n_calls, batch, input_size), jnp.float32)
    outb = jax.block_until_ready(generator_forward_batched(xb, params, output_size))
    assert outb.shape == (n_calls, batch, output_size)
    assert bool(jnp.all(jnp.isfinite(outb)))

    # Single-call convenience path; must match grid step 0 of the fused call.
    out1 = jax.block_until_ready(generator_forward(xb[0], params, output_size))
    assert out1.shape == (batch, output_size)
    assert bool(jnp.allclose(out1, outb[0], atol=1e-5, rtol=1e-5))

    print("KERNEL_OK")
</pallas_src>

<mosaic_0001>
module attributes {stable_mosaic.version = 11 : i64} {
  func.func @generator_kernel(%arg0: i32, %arg1: memref<1x8x128xbf16, #tpu.memory_space<vmem>>, %arg2: memref<128x896xbf16, #tpu.memory_space<vmem>>, %arg3: memref<8x128xf32, #tpu.memory_space<vmem>>, %arg4: memref<1x8x128xf32, #tpu.memory_space<vmem>>) attributes {dimension_semantics = [#tpu.dimension_semantics<parallel>], iteration_bounds = array<i64: 4>, scalar_prefetch = 0 : i64, scratch_operands = 0 : i64, tpu.core_type = #tpu.core_type<tc>, window_params = [{transform_indices = @transform_0, window_bounds = array<i64: 1, 8, 128>}, {pipeline_mode = #tpu.pipeline_mode<synchronous>, transform_indices = @transform_1, window_bounds = array<i64: 128, 896>}, {pipeline_mode = #tpu.pipeline_mode<synchronous>, transform_indices = @transform_2, window_bounds = array<i64: 8, 128>}, {transform_indices = @transform_3, window_bounds = array<i64: 1, 8, 128>}]} {
    %c0 = arith.constant 0 : index
    %c0_0 = arith.constant 0 : index
    %0 = vector.load %arg3[%c0, %c0_0] : memref<8x128xf32, #tpu.memory_space<vmem>>, vector<8x128xf32>
    %1 = vector.extract_strided_slice %0 {offsets = [0, 0], sizes = [1, 128], strides = [1, 1]} : vector<8x128xf32> to vector<1x128xf32>
    %2 = vector.extract_strided_slice %0 {offsets = [1, 0], sizes = [1, 128], strides = [1, 1]} : vector<8x128xf32> to vector<1x128xf32>
    %3 = vector.extract_strided_slice %0 {offsets = [2, 0], sizes = [1, 128], strides = [1, 1]} : vector<8x128xf32> to vector<1x128xf32>
    %4 = vector.extract_strided_slice %0 {offsets = [3, 0], sizes = [1, 128], strides = [1, 1]} : vector<8x128xf32> to vector<1x128xf32>
    %5 = vector.extract_strided_slice %0 {offsets = [4, 0], sizes = [1, 128], strides = [1, 1]} : vector<8x128xf32> to vector<1x128xf32>
    %6 = vector.extract_strided_slice %0 {offsets = [5, 0], sizes = [1, 128], strides = [1, 1]} : vector<8x128xf32> to vector<1x128xf32>
    %7 = vector.extract_strided_slice %0 {offsets = [6, 0], sizes = [1, 128], strides = [1, 1]} : vector<8x128xf32> to vector<1x128xf32>
    %8 = vector.extract_strided_slice %0 {offsets = [7, 0], sizes = [1, 128], strides = [1, 1]} : vector<8x128xf32> to vector<1x128xf32>
    %c0_1 = arith.constant 0 : index
    %c0_2 = arith.constant 0 : index
    %9 = vector.load %arg2[%c0_1, %c0_2] : memref<128x896xbf16, #tpu.memory_space<vmem>>, vector<128x128xbf16>
    %c0_3 = arith.constant 0 : index
    %c128 = arith.constant 128 : index
    %10 = vector.load %arg2[%c0_3, %c128] : memref<128x896xbf16, #tpu.memory_space<vmem>>, vector<128x384xbf16>
    %c0_4 = arith.constant 0 : index
    %c512 = arith.constant 512 : index
    %11 = vector.load %arg2[%c0_4, %c512] : memref<128x896xbf16, #tpu.memory_space<vmem>>, vector<128x128xbf16>
    %c0_5 = arith.constant 0 : index
    %c640 = arith.constant 640 : index
    %12 = vector.load %arg2[%c0_5, %c640] : memref<128x896xbf16, #tpu.memory_space<vmem>>, vector<128x128xbf16>
    %c0_6 = arith.constant 0 : index
    %c768 = arith.constant 768 : index
    %13 = vector.load %arg2[%c0_6, %c768] : memref<128x896xbf16, #tpu.memory_space<vmem>>, vector<128x128xbf16>
    %c0_7 = arith.constant 0 : index
    %c0_8 = arith.constant 0 : index
    %c0_9 = arith.constant 0 : index
    %14 = vector.load %arg1[%c0_7, %c0_8, %c0_9] : memref<1x8x128xbf16, #tpu.memory_space<vmem>>, vector<1x8x128xbf16>
    %15 = vector.shape_cast %14 : vector<1x8x128xbf16> to vector<8x128xbf16>
    %cst = arith.constant dense<0.000000e+00> : vector<8x128xf32>
    %16 = tpu.matmul %15, %9, %cst {dimension_numbers = #tpu.dot_dimension_numbers<[1], [0], [0], [1], [0, 0, 1, 1], [], []>} : vector<8x128xbf16>, vector<128x128xbf16>, vector<8x128xf32> -> vector<8x128xf32>
    %17 = vector.broadcast %1 : vector<1x128xf32> to vector<8x128xf32>
    %18 = arith.addf %16, %17 : vector<8x128xf32>
    %cst_10 = arith.constant 0.000000e+00 : f32
    %19 = vector.broadcast %cst_10 : f32 to vector<8x128xf32>
    %20 = arith.cmpf oge, %18, %19 : vector<8x128xf32>
    %cst_11 = arith.constant 0.00999999977 : f32
    %21 = vector.broadcast %cst_11 : f32 to vector<8x128xf32>
    %22 = arith.mulf %21, %18 : vector<8x128xf32>
    %23 = arith.select %20, %18, %22 : vector<8x128xi1>, vector<8x128xf32>
    %24 = arith.truncf %23 : vector<8x128xf32> to vector<8x128xbf16>
    %cst_12 = arith.constant dense<0.000000e+00> : vector<8x384xf32>
    %25 = tpu.matmul %24, %10, %cst_12 {dimension_numbers = #tpu.dot_dimension_numbers<[1], [0], [0], [1], [0, 0, 1, 1], [], []>} : vector<8x128xbf16>, vector<128x384xbf16>, vector<8x384xf32> -> vector<8x384xf32>
    %26 = vector.extract_strided_slice %25 {offsets = [0, 0], sizes = [8, 128], strides = [1, 1]} : vector<8x384xf32> to vector<8x128xf32>
    %27 = vector.extract_strided_slice %25 {offsets = [0, 128], sizes = [8, 128], strides = [1, 1]} : vector<8x384xf32> to vector<8x128xf32>
    %28 = arith.maximumf %26, %27 : vector<8x128xf32>
    %29 = vector.extract_strided_slice %25 {offsets = [0, 256], sizes = [8, 128], strides = [1, 1]} : vector<8x384xf32> to vector<8x128xf32>
    %30 = arith.maximumf %28, %29 : vector<8x128xf32>
    %cst_13 = arith.constant dense<0.000000e+00> : vector<128xf32>
    %31 = vector.multi_reduction <add>, %30, %cst_13 [0] : vector<8x128xf32> to vector<128xf32>
    %32 = vector.shape_cast %31 : vector<128xf32> to vector<1x128xf32>
    %cst_14 = arith.constant 8.000000e+00 : f32
    %33 = vector.broadcast %cst_14 : f32 to vector<1x128xf32>
    %34 = arith.divf %32, %33 : vector<1x128xf32>
    %35 = arith.mulf %30, %30 : vector<8x128xf32>
    %cst_15 = arith.constant dense<0.000000e+00> : vector<128xf32>
    %36 = vector.multi_reduction <add>, %35, %cst_15 [0] : vector<8x128xf32> to vector<128xf32>
    %37 = vector.shape_cast %36 : vector<128xf32> to vector<1x128xf32>
    %cst_16 = arith.constant 8.000000e+00 : f32
    %38 = vector.broadcast %cst_16 : f32 to vector<1x128xf32>
    %39 = arith.divf %37, %38 : vector<1x128xf32>
    %40 = arith.mulf %34, %34 : vector<1x128xf32>
    %41 = arith.subf %39, %40 : vector<1x128xf32>
    %cst_17 = arith.constant 0.000000e+00 : f32
    %42 = vector.broadcast %cst_17 : f32 to vector<1x128xf32>
    %43 = arith.maximumf %41, %42 : vector<1x128xf32>
    %44 = vector.broadcast %34 : vector<1x128xf32> to vector<8x128xf32>
    %45 = arith.subf %30, %44 : vector<8x128xf32>
    %46 = vector.broadcast %5 : vector<1x128xf32> to vector<8x128xf32>
    %47 = arith.mulf %46, %45 : vector<8x128xf32>
    %cst_18 = arith.constant 9.99999974E-6 : f32
    %48 = vector.broadcast %cst_18 : f32 to vector<1x128xf32>
    %49 = arith.addf %43, %48 : vector<1x128xf32>
    %50 = math.rsqrt %49 : vector<1x128xf32>
    %51 = vector.broadcast %50 : vector<1x128xf32> to vector<8x128xf32>
    %52 = arith.mulf %47, %51 : vector<8x128xf32>
    %53 = vector.broadcast %6 : vector<1x128xf32> to vector<8x128xf32>
    %54 = arith.addf %52, %53 : vector<8x128xf32>
    %55 = arith.truncf %54 : vector<8x128xf32> to vector<8x128xbf16>
    %cst_19 = arith.constant dense<0.000000e+00> : vector<8x128xf32>
    %56 = tpu.matmul %55, %11, %cst_19 {dimension_numbers = #tpu.dot_dimension_numbers<[1], [0], [0], [1], [0, 0, 1, 1], [], []>} : vector<8x128xbf16>, vector<128x128xbf16>, vector<8x128xf32> -> vector<8x128xf32>
    %57 = vector.broadcast %2 : vector<1x128xf32> to vector<8x128xf32>
    %58 = arith.addf %56, %57 : vector<8x128xf32>
    %cst_20 = arith.constant 0.000000e+00 : f32
    %59 = vector.broadcast %cst_20 : f32 to vector<8x128xf32>
    %60 = arith.cmpf oge, %58, %59 : vector<8x128xf32>
    %cst_21 = arith.constant 0.00999999977 : f32
    %61 = vector.broadcast %cst_21 : f32 to vector<8x128xf32>
    %62 = arith.mulf %61, %58 : vector<8x128xf32>
    %63 = arith.select %60, %58, %62 : vector<8x128xi1>, vector<8x128xf32>
    %64 = arith.truncf %63 : vector<8x128xf32> to vector<8x128xbf16>
    %cst_22 = arith.constant dense<0.000000e+00> : vector<8x128xf32>
    %65 = tpu.matmul %64, %12, %cst_22 {dimension_numbers = #tpu.dot_dimension_numbers<[1], [0], [0], [1], [0, 0, 1, 1], [], []>} : vector<8x128xbf16>, vector<128x128xbf16>, vector<8x128xf32> -> vector<8x128xf32>
    %66 = vector.broadcast %3 : vector<1x128xf32> to vector<8x128xf32>
    %67 = arith.addf %65, %66 : vector<8x128xf32>
    %cst_23 = arith.constant dense<0.000000e+00> : vector<128xf32>
    %68 = vector.multi_reduction <add>, %67, %cst_23 [0] : vector<8x128xf32> to vector<128xf32>
    %69 = vector.shape_cast %68 : vector<128xf32> to vector<1x128xf32>
    %cst_24 = arith.constant 8.000000e+00 : f32
    %70 = vector.broadcast %cst_24 : f32 to vector<1x128xf32>
    %71 = arith.divf %69, %70 : vector<1x128xf32>
    %72 = arith.mulf %67, %67 : vector<8x128xf32>
    %cst_25 = arith.constant dense<0.000000e+00> : vector<128xf32>
    %73 = vector.multi_reduction <add>, %72, %cst_25 [0] : vector<8x128xf32> to vector<128xf32>
    %74 = vector.shape_cast %73 : vector<128xf32> to vector<1x128xf32>
    %cst_26 = arith.constant 8.000000e+00 : f32
    %75 = vector.broadcast %cst_26 : f32 to vector<1x128xf32>
    %76 = arith.divf %74, %75 : vector<1x128xf32>
    %77 = arith.mulf %71, %71 : vector<1x128xf32>
    %78 = arith.subf %76, %77 : vector<1x128xf32>
    %cst_27 = arith.constant 0.000000e+00 : f32
    %79 = vector.broadcast %cst_27 : f32 to vector<1x128xf32>
    %80 = arith.maximumf %78, %79 : vector<1x128xf32>
    %81 = vector.broadcast %71 : vector<1x128xf32> to vector<8x128xf32>
    %82 = arith.subf %67, %81 : vector<8x128xf32>
    %83 = vector.broadcast %7 : vector<1x128xf32> to vector<8x128xf32>
    %84 = arith.mulf %83, %82 : vector<8x128xf32>
    %cst_28 = arith.constant 9.99999974E-6 : f32
    %85 = vector.broadcast %cst_28 : f32 to vector<1x128xf32>
    %86 = arith.addf %80, %85 : vector<1x128xf32>
    %87 = math.rsqrt %86 : vector<1x128xf32>
    %88 = vector.broadcast %87 : vector<1x128xf32> to vector<8x128xf32>
    %89 = arith.mulf %84, %88 : vector<8x128xf32>
    %90 = vector.broadcast %8 : vector<1x128xf32> to vector<8x128xf32>
    %91 = arith.addf %89, %90 : vector<8x128xf32>
    %cst_29 = arith.constant 0.000000e+00 : f32
    %92 = vector.broadcast %cst_29 : f32 to vector<8x128xf32>
    %93 = arith.cmpf oge, %91, %92 : vector<8x128xf32>
    %cst_30 = arith.constant 0.00999999977 : f32
    %94 = vector.broadcast %cst_30 : f32 to vector<8x128xf32>
    %95 = arith.mulf %94, %91 : vector<8x128xf32>
    %96 = arith.select %93, %91, %95 : vector<8x128xi1>, vector<8x128xf32>
    %97 = arith.truncf %96 : vector<8x128xf32> to vector<8x128xbf16>
    %cst_31 = arith.constant dense<0.000000e+00> : vector<8x128xf32>
    %98 = tpu.matmul %97, %13, %cst_31 {dimension_numbers = #tpu.dot_dimension_numbers<[1], [0], [0], [1], [0, 0, 1, 1], [], []>} : vector<8x128xbf16>, vector<128x128xbf16>, vector<8x128xf32> -> vector<8x128xf32>
    %99 = vector.broadcast %4 : vector<1x128xf32> to vector<8x128xf32>
    %100 = arith.addf %98, %99 : vector<8x128xf32>
    %cst_32 = arith.constant 0.000000e+00 : f32
    %101 = vector.broadcast %cst_32 : f32 to vector<8x128xf32>
    %102 = arith.cmpf oge, %100, %101 : vector<8x128xf32>
    %cst_33 = arith.constant 1.000000e-01 : f32
    %103 = vector.broadcast %cst_33 : f32 to vector<8x128xf32>
    %104 = arith.mulf %103, %100 : vector<8x128xf32>
    %105 = arith.select %102, %100, %104 : vector<8x128xi1>, vector<8x128xf32>
    %c0_34 = arith.constant 0 : index
    %c0_35 = arith.constant 0 : index
    %c0_36 = arith.constant 0 : index
    %106 = vector.load %arg4[%c0_34, %c0_35, %c0_36] : memref<1x8x128xf32, #tpu.memory_space<vmem>>, vector<1x8x128xf32>
    %107 = vector.shape_cast %106 : vector<1x8x128xf32> to vector<8x128xf32>
    %108 = vector.shape_cast %105 : vector<8x128xf32> to vector<1x8x128xf32>
    tpu.vector_store %arg4[%c0_34, %c0_35, %c0_36], %108 {strides = array<i32>} : memref<1x8x128xf32, #tpu.memory_space<vmem>>, vector<1x8x128xf32>,
    return
  }
  func.func @transform_0(%arg0: i32) -> (i32, i32, i32) {
    %c0_i32 = arith.constant 0 : i32
    %c0_i32_0 = arith.constant 0 : i32
    %c0_i32_1 = arith.constant 0 : i32
    return %arg0, %c0_i32, %c0_i32_0 : i32, i32, i32
  }
  func.func @transform_1(%arg0: i32) -> (i32, i32) {
    %c0_i32 = arith.constant 0 : i32
    %c0_i32_0 = arith.constant 0 : i32
    %c0_i32_1 = arith.constant 0 : i32
    return %c0_i32, %c0_i32_0 : i32, i32
  }
  func.func @transform_2(%arg0: i32) -> (i32, i32) {
    %c0_i32 = arith.constant 0 : i32
    %c0_i32_0 = arith.constant 0 : i32
    %c0_i32_1 = arith.constant 0 : i32
    return %c0_i32, %c0_i32_0 : i32, i32
  }
  func.func @transform_3(%arg0: i32) -> (i32, i32, i32) {
    %c0_i32 = arith.constant 0 : i32
    %c0_i32_0 = arith.constant 0 : i32
    %c0_i32_1 = arith.constant 0 : i32
    return %arg0, %c0_i32, %c0_i32_0 : i32, i32, i32
  }
}

</mosaic_0001>

<llo_original>
// kernel: tpu_custom_call.1
$region0: #{tpu_custom_call.1}
  #allocation0 [shape = 'u32[]', space=smem, size = 0x4, offset = 0x4, fixed_abs, tag = 'smem constant byte address 0x4 - core index']
  #allocation1 [shape = 'u32[144,128]{1,0:T(1,128)}', space=vmem, size = 0x12000, scoped, tag = 'internal scratch']
  %s0 = inlined_call_operand.hbm [shape: bf16[4,8,128], index: 0, kind: input, shape index: {}]
  %s1 = inlined_call_operand.hbm [shape: bf16[128,896], index: 1, kind: input, shape index: {}]
  %s2 = inlined_call_operand.hbm [shape: f32[8,128], index: 2, kind: input, shape index: {}]
  %s3 = inlined_call_operand.hbm [shape: f32[4,8,128], index: 3, kind: output, shape index: {}]
  %s4 = sld [smem:[#allocation0]]
  $region57: #{tpu_custom_call.1} parent=0
    _
  %s6 = ssub.s32 1, %s4
  %s7 = scalar_select 0, %s6, %s4
  $region1: #{tpu_custom_call.1} parent=0
    #allocation2 [shape = 'u8[4096]{0}', space=vmem, size = 0x1000, scoped, tag = 'input window, operand 0']
    #allocation3 [shape = 's32[2]{0}', space=sflag, size = 0x8, scoped, tag = 'scoped memory for tpu_custom_call.1']
    #allocation4 [shape = 's32[2]{0}', space=sflag, size = 0x8, scoped, tag = 'scoped memory for tpu_custom_call.1']
    #allocation5 [shape = 'u8[229376]{0}', space=vmem, size = 0x38000, scoped, tag = 'input window, operand 1, single buffered']
    #allocation6 [shape = 's32[1]{0}', space=sflag, size = 0x4, scoped, tag = 'scoped memory for tpu_custom_call.1']
    #allocation7 [shape = 'u8[4096]{0}', space=vmem, size = 0x1000, scoped, tag = 'input window, operand 2, single buffered']
    #allocation8 [shape = 'u8[8192]{0}', space=vmem, size = 0x2000, scoped, tag = 'output window, operand 0']
    %8 = vsyncpa [#allocation3], 0
    %s9 = scalar_lea.sflag [#allocation3], 1
    %10 = vsyncpa %s9, 0
    %11 = vsyncpa [#allocation6], 0
    %12 = vsyncpa [#allocation4], 0
    %s13 = scalar_lea.sflag [#allocation4], 1
    %14 = vsyncpa %s13, 0
    loop: start=0, step=1, limit=6
    $region2: #{tpu_custom_call.1} parent=1 // loop_pre_header
      _
    $region3: #{tpu_custom_call.1} parent=1 // loop_header
      %s16 = sphi 0, %s20
      %p17 = scmp.ge.s32.totalorder %s16, 6
      %s26 = sphi 0, %s28
      %s29 = sphi 0, %s26
      %s30 = sphi 0, %s29
      %s46 = sphi 0, %s30
      %s50 = sphi 0, %s50
      %s52 = sphi 0, %s50
      %s53 = sphi 0, %s52
      %s67 = sphi 0, %s53
      %s71 = sphi 0, %s71
      %s73 = sphi 0, %s71
      %s74 = sphi 0, %s73
      %s88 = sphi 0, %s74
      %s94 = sphi 0, %s96
      %s97 = sphi 0, %s94
      %s98 = sphi 0, %s97
      %s114 = sphi 0, %s98
    $region4: #{tpu_custom_call.1} parent=1 // loop_header_branch
      %19 = sbr.rel (%p17) target = $region8
    $region5: #{tpu_custom_call.1} parent=1 // loop_body
      %s21 = ssub.s32 %s16, 1
      %s22 = ssub.s32 %s16, 2
      %s23 = sadd.s32 %s16, 1
      %s24 = ssub.s32 %s16, %s23
      %p25 = scmp.eq.s32.totalorder %s24, 0
      %s27 = sadd.s32 %s26, 1
      %s28 = scalar_select %p25, %s26, %s27
      %p31 = pneg %p25
      %p32 = scmp.eq.s32.totalorder %s16, 3
      %p33 = por %p31, %p32
      %p34 = scmp.ne.s32.totalorder %s26, %s29
      %p35 = scmp.eq.s32.totalorder %s16, 0
      %p36 = por %p34, %p35
      %p37 = scmp.ne.s32.totalorder %s26, %s29
      %p38 = scmp.eq.s32.totalorder %s21, 3
      %p39 = por %p37, %p38
      %p40 = scmp.ne.s32.totalorder %s29, %s30
      %p41 = scmp.eq.s32.totalorder %s21, 0
      %p42 = por %p40, %p41
      %p43 = scmp.ne.s32.totalorder %s29, %s30
      %p44 = scmp.eq.s32.totalorder %s22, 3
      %p45 = por %p43, %p44
      %p47 = scmp.ne.s32.totalorder %s30, %s46
      %p48 = scmp.eq.s32.totalorder %s22, 0
      %p49 = por %p47, %p48
      %s51 = sadd.s32 %s50, 1
      %p54 = scmp.eq.s32.totalorder %s16, 3
      %p55 = scmp.ne.s32.totalorder %s50, %s52
      %p56 = scmp.eq.s32.totalorder %s16, 0
      %p57 = por %p55, %p56
      %p58 = scmp.ne.s32.totalorder %s50, %s52
      %p59 = scmp.eq.s32.totalorder %s21, 3
      %p60 = por %p58, %p59
      %p61 = scmp.ne.s32.totalorder %s52, %s53
      %p62 = scmp.eq.s32.totalorder %s21, 0
      %p63 = por %p61, %p62
      %p64 = scmp.ne.s32.totalorder %s52, %s53
      %p65 = scmp.eq.s32.totalorder %s22, 3
      %p66 = por %p64, %p65
      %p68 = scmp.ne.s32.totalorder %s53, %s67
      %p69 = scmp.eq.s32.totalorder %s22, 0
      %p70 = por %p68, %p69
      %s72 = sadd.s32 %s71, 1
      %p75 = scmp.eq.s32.totalorder %s16, 3
      %p76 = scmp.ne.s32.totalorder %s71, %s73
      %p77 = scmp.eq.s32.totalorder %s16, 0
      %p78 = por %p76, %p77
      %p79 = scmp.ne.s32.totalorder %s71, %s73
      %p80 = scmp.eq.s32.totalorder %s21, 3
      %p81 = por %p79, %p80
      %p82 = scmp.ne.s32.totalorder %s73, %s74
      %p83 = scmp.eq.s32.totalorder %s21, 0
      %p84 = por %p82, %p83
      %p85 = scmp.ne.s32.totalorder %s73, %s74
      %p86 = scmp.eq.s32.totalorder %s22, 3
      %p87 = por %p85, %p86
      %p89 = scmp.ne.s32.totalorder %s74, %s88
      %p90 = scmp.eq.s32.totalorder %s22, 0
      %p91 = por %p89, %p90
      %s92 = ssub.s32 %s16, %s23
      %p93 = scmp.eq.s32.totalorder %s92, 0
      %s95 = sadd.s32 %s94, 1
      %s96 = scalar_select %p93, %s94, %s95
      %p99 = pneg %p93
      %p100 = scmp.eq.s32.totalorder %s16, 3
      %p101 = por %p99, %p100
      %p102 = scmp.ne.s32.totalorder %s94, %s97
      %p103 = scmp.eq.s32.totalorder %s16, 0
      %p104 = por %p102, %p103
      %p105 = scmp.ne.s32.totalorder %s94, %s97
      %p106 = scmp.eq.s32.totalorder %s21, 3
      %p107 = por %p105, %p106
      %p108 = scmp.ne.s32.totalorder %s97, %s98
      %p109 = scmp.eq.s32.totalorder %s21, 0
      %p110 = por %p108, %p109
      %p111 = scmp.ne.s32.totalorder %s97, %s98
      %p112 = scmp.eq.s32.totalorder %s22, 3
      %p113 = por %p111, %p112
      %p115 = scmp.ne.s32.totalorder %s98, %s114
      %p116 = scmp.eq.s32.totalorder %s22, 0
      %p117 = por %p115, %p116
      %p118 = scmp.le.s32.totalorder 1, %s16
      %p119 = scmp.lt.s32.totalorder %s16, 5
      %p120 = pnand %p118, %p119
      %p121 = pneg %p120
      // Predicated region
      $region9: #{tpu_custom_call.1} parent=5 // pred_check
        _
      $region10: #{tpu_custom_call.1} parent=5 // pred_check_branch
        %123 = sbr.rel (%p120) target = $region12
      $region11: #{tpu_custom_call.1} parent=5 // pred_region
        %s124 = ssub.s32 %s16, 1
        // Predicated region
        $region13: #{tpu_custom_call.1} parent=11 // pred_check
          %p125 = pneg %p63
        $region14: #{tpu_custom_call.1} parent=11 // pred_check_branch
          %127 = sbr.rel (%p125) target = $region16
        $region15: #{tpu_custom_call.1} parent=11 // pred_region
          %s129 = ssub.s32 7168, 7168
          %130 = vsyncadd [#allocation6], %s129
          %s131 = sshll.u32 [#allocation5], 4
          %s132 = int_to_ptr.vmem [resolvable:$true] %s131
          %137 = dma.hbm_to_vmem [thread:$0]  %s1, 7168, %s132, [#allocation6], 448, 448, 28
        $region16: #{tpu_custom_call.1} parent=11 // pred_fallthru
          _
        // Predicated region
        $region17: #{tpu_custom_call.1} parent=11 // pred_check
          %p138 = pneg %p84
        $region18: #{tpu_custom_call.1} parent=11 // pred_check_branch
          %140 = sbr.rel (%p138) target = $region20
        $region19: #{tpu_custom_call.1} parent=11 // pred_region
          %s142 = ssub.s32 128, 128
          %143 = vsyncadd [#allocation6], %s142
          %s145 = sshll.u32 [#allocation7], 4
          %s146 = int_to_ptr.vmem [resolvable:$true] %s145
          %148 = dma.hbm_to_vmem [thread:$0]  %s2, 128, %s146, [#allocation6]
        $region20: #{tpu_custom_call.1} parent=11 // pred_fallthru
          _
      $region12: #{tpu_custom_call.1} parent=5 // pred_fallthru
        _
      %p149 = scmp.lt.s32.totalorder %s16, 4
      // Predicated region
      $region21: #{tpu_custom_call.1} parent=5 // pred_check
        %p150 = pneg %p149
      $region22: #{tpu_custom_call.1} parent=5 // pred_check_branch
        %152 = sbr.rel (%p150) target = $region24
      $region23: #{tpu_custom_call.1} parent=5 // pred_region
        // Predicated region
        $region25: #{tpu_custom_call.1} parent=23 // pred_check
          %p153 = pneg %p36
        $region26: #{tpu_custom_call.1} parent=23 // pred_check_branch
          %155 = sbr.rel (%p153) target = $region28
        $region27: #{tpu_custom_call.1} parent=23 // pred_region
          %s156 = sand.u32 %s26, 1
          %s157 = scalar_lea.sflag [#allocation3], %s156
          %s158 = sand.u32 %s26, 1
          %s159 = smul.addr %s158, 4
          %s160 = scalar_lea.vmem [#allocation2], %s159
          %s162 = ssub.s32 64, 64
          %163 = vsyncadd %s157, %s162
          %s164 = smul.addr %s16, 64
          %s165 = scalar_lea.hbm %s0, %s164
          %s167 = sshll.u32 %s160, 4
          %s168 = int_to_ptr.vmem [resolvable:$true] %s167
          %170 = dma.hbm_to_vmem [thread:$0]  %s165, 64, %s168, %s157
        $region28: #{tpu_custom_call.1} parent=23 // pred_fallthru
          _
      $region24: #{tpu_custom_call.1} parent=5 // pred_fallthru
        _
      %p171 = scmp.le.s32.totalorder 1, %s16
      %p172 = scmp.lt.s32.totalorder %s16, 5
      %p173 = pnand %p171, %p172
      %p174 = pneg %p173
      // Predicated region
      $region29: #{tpu_custom_call.1} parent=5 // pred_check
        _
      $region30: #{tpu_custom_call.1} parent=5 // pred_check_branch
        %176 = sbr.rel (%p173) target = $region32
      $region31: #{tpu_custom_call.1} parent=5 // pred_region
        %s177 = ssub.s32 %s16, 1
        %s178 = sand.u32 %s29, 1
        %s179 = scalar_lea.sflag [#allocation3], %s178
        %s180 = sand.u32 %s29, 1
        %s181 = smul.addr %s180, 4
        %s182 = scalar_lea.vmem [#allocation2], %s181
        // Predicated region
        $region33: #{tpu_custom_call.1} parent=31 // pred_check
          %p183 = pneg %p42
        $region34: #{tpu_custom_call.1} parent=31 // pred_check_branch
          %185 = sbr.rel (%p183) target = $region36
        $region35: #{tpu_custom_call.1} parent=31 // pred_region
          %186 = dma.done %s179, 64
        $region36: #{tpu_custom_call.1} parent=31 // pred_fallthru
          _
        // Predicated region
        $region37: #{tpu_custom_call.1} parent=31 // pred_check
          %p187 = pneg %p63
        $region38: #{tpu_custom_call.1} parent=31 // pred_check_branch
          %189 = sbr.rel (%p187) target = $region40
        $region39: #{tpu_custom_call.1} parent=31 // pred_region
          %190 = dma.done [#allocation6], 7168
        $region40: #{tpu_custom_call.1} parent=31 // pred_fallthru
          _
        // Predicated region
        $region41: #{tpu_custom_call.1} parent=31 // pred_check
          %p191 = pneg %p84
        $region42: #{tpu_custom_call.1} parent=31 // pred_check_branch
          %193 = sbr.rel (%p191) target = $region44
        $region43: #{tpu_custom_call.1} parent=31 // pred_region
          %194 = dma.done [#allocation6], 128
        $region44: #{tpu_custom_call.1} parent=31 // pred_fallthru
          _
        %s195 = sand.u32 %s29, 1
        %s196 = scalar_lea.sflag [#allocation3], %s195
        %s197 = sand.u32 %s29, 1
        %s198 = smul.addr %s197, 4
        %s199 = scalar_lea.vmem [#allocation2], %s198
        %p200 = pneg %p42
        %p201 = pneg %p39
        %p202 = pneg %p63
        %p203 = pneg %p60
        %p204 = pneg %p84
        %p205 = pneg %p81
        %p206 = pneg %p110
        %p207 = pneg %p107
        %s208 = sand.u32 %s97, 1
        %s209 = scalar_lea.sflag [#allocation4], %s208
        %s210 = sand.u32 %s97, 1
        %s211 = smul.addr %s210, 8
        %s212 = scalar_lea.vmem [#allocation8], %s211
        %v214 = vld [vmem:[#allocation7] sm:$0xff]
        %v215 = vld [vmem:[#allocation5] sm:$0xf]
        %v216 = vld [vmem:[#allocation5 + $0x1c] sm:$0xf]
        %v217 = vld [vmem:[#allocation5 + $0x38] sm:$0xf]
        %v218 = vld [vmem:[#allocation5 + $0x54] sm:$0xf]
        %v219 = vld [vmem:[#allocation5 + $0x70] sm:$0xf]
        %v220 = vld [vmem:[#allocation5 + $0x8c] sm:$0xf]
        %v221 = vld [vmem:[#allocation5 + $0xa8] sm:$0xf]
        %v222 = vld [vmem:[#allocation5 + $0xc4] sm:$0xf]
        %v223 = vld [vmem:[#allocation5 + $0xe0] sm:$0xf]
        %v224 = vld [vmem:[#allocation5 + $0xfc] sm:$0xf]
        %v225 = vld [vmem:[#allocation5 + $0x118] sm:$0xf]
        %v226 = vld [vmem:[#allocation5 + $0x134] sm:$0xf]
        %v227 = vld [vmem:[#allocation5 + $0x150] sm:$0xf]
        %v228 = vld [vmem:[#allocation5 + $0x16c] sm:$0xf]
        %v229 = vld [vmem:[#allocation5 + $0x188] sm:$0xf]
        %v230 = vld [vmem:[#allocation5 + $0x1a4] sm:$0xf]
        %v231 = vld [vmem:[#allocation5 + $0x4] sm:$0xff]
        %v232 = vld [vmem:[#allocation5 + $0xc] sm:$0xf]
        %v233 = vld [vmem:[#allocation5 + $0x20] sm:$0xff]
        %v234 = vld [vmem:[#allocation5 + $0x28] sm:$0xf]
        %v235 = vld [vmem:[#allocation5 + $0x3c] sm:$0xff]
        %v236 = vld [vmem:[#allocation5 + $0x44] sm:$0xf]
        %v237 = vld [vmem:[#allocation5 + $0x58] sm:$0xff]
        %v238 = vld [vmem:[#allocation5 + $0x60] sm:$0xf]
        %v239 = vld [vmem:[#allocation5 + $0x74] sm:$0xff]
        %v240 = vld [vmem:[#allocation5 + $0x7c] sm:$0xf]
        %v241 = vld [vmem:[#allocation5 + $0x90] sm:$0xff]
        %v242 = vld [vmem:[#allocation5 + $0x98] sm:$0xf]
        %v243 = vld [vmem:[#allocation5 + $0xac] sm:$0xff]
        %v244 = vld [vmem:[#allocation5 + $0xb4] sm:$0xf]
        %v245 = vld [vmem:[#allocation5 + $0xc8] sm:$0xff]
        %v246 = vld [vmem:[#allocation5 + $0xd0] sm:$0xf]
        %v247 = vld [vmem:[#allocation5 + $0xe4] sm:$0xff]
        %v248 = vld [vmem:[#allocation5 + $0xec] sm:$0xf]
        %v249 = vld [vmem:[#allocation5 + $0x100] sm:$0xff]
        %v250 = vld [vmem:[#allocation5 + $0x108] sm:$0xf]
        %v251 = vld [vmem:[#allocation5 + $0x11c] sm:$0xff]
        %v252 = vld [vmem:[#allocation5 + $0x124] sm:$0xf]
        %v253 = vld [vmem:[#allocation5 + $0x138] sm:$0xff]
        %v254 = vld [vmem:[#allocation5 + $0x140] sm:$0xf]
        %v255 = vld [vmem:[#allocation5 + $0x154] sm:$0xff]
        %v256 = vld [vmem:[#allocation5 + $0x15c] sm:$0xf]
        %v257 = vld [vmem:[#allocation5 + $0x170] sm:$0xff]
        %v258 = vld [vmem:[#allocation5 + $0x178] sm:$0xf]
        %v259 = vld [vmem:[#allocation5 + $0x18c] sm:$0xff]
        %v260 = vld [vmem:[#allocation5 + $0x194] sm:$0xf]
        %v261 = vld [vmem:[#allocation5 + $0x1a8] sm:$0xff]
        %v262 = vld [vmem:[#allocation5 + $0x1b0] sm:$0xf]
        %v263 = vld [vmem:[#allocation5 + $0x10] sm:$0xf]
        %v264 = vld [vmem:[#allocation5 + $0x2c] sm:$0xf]
        %v265 = vld [vmem:[#allocation5 + $0x48] sm:$0xf]
        %v266 = vld [vmem:[#allocation5 + $0x64] sm:$0xf]
        %v267 = vld [vmem:[#allocation5 + $0x80] sm:$0xf]
        %v268 = vld [vmem:[#allocation5 + $0x9c] sm:$0xf]
        %v269 = vld [vmem:[#allocation5 + $0xb8] sm:$0xf]
        %v270 = vld [vmem:[#allocation5 + $0xd4] sm:$0xf]
        %v271 = vld [vmem:[#allocation5 + $0xf0] sm:$0xf]
        %v272 = vld [vmem:[#allocation5 + $0x10c] sm:$0xf]
        %v273 = vld [vmem:[#allocation5 + $0x128] sm:$0xf]
        %v274 = vld [vmem:[#allocation5 + $0x144] sm:$0xf]
        %v275 = vld [vmem:[#allocation5 + $0x160] sm:$0xf]
        %v276 = vld [vmem:[#allocation5 + $0x17c] sm:$0xf]
        %v277 = vld [vmem:[#allocation5 + $0x198] sm:$0xf]
        %v278 = vld [vmem:[#allocation5 + $0x1b4] sm:$0xf]
        %v279 = vld [vmem:[#allocation5 + $0x14] sm:$0xf]
        %v280 = vld [vmem:[#allocation5 + $0x30] sm:$0xf]
        %v281 = vld [vmem:[#allocation5 + $0x4c] sm:$0xf]
        %v282 = vld [vmem:[#allocation5 + $0x68] sm:$0xf]
        %v283 = vld [vmem:[#allocation5 + $0x84] sm:$0xf]
        %v284 = vld [vmem:[#allocation5 + $0xa0] sm:$0xf]
        %v285 = vld [vmem:[#allocation5 + $0xbc] sm:$0xf]
        %v286 = vld [vmem:[#allocation5 + $0xd8] sm:$0xf]
        %v287 = vld [vmem:[#allocation5 + $0xf4] sm:$0xf]
        %v288 = vld [vmem:[#allocation5 + $0x110] sm:$0xf]
        %v289 = vld [vmem:[#allocation5 + $0x12c] sm:$0xf]
        %v290 = vld [vmem:[#allocation5 + $0x148] sm:$0xf]
        %v291 = vld [vmem:[#allocation5 + $0x164] sm:$0xf]
        %v292 = vld [vmem:[#allocation5 + $0x180] sm:$0xf]
        %v293 = vld [vmem:[#allocation5 + $0x19c] sm:$0xf]
        %v294 = vld [vmem:[#allocation5 + $0x1b8] sm:$0xf]
        %v295 = vld [vmem:[#allocation5 + $0x18] sm:$0xf]
        %v296 = vld [vmem:[#allocation5 + $0x34] sm:$0xf]
        %v297 = vld [vmem:[#allocation5 + $0x50] sm:$0xf]
        %v298 = vld [vmem:[#allocation5 + $0x6c] sm:$0xf]
        %v299 = vld [vmem:[#allocation5 + $0x88] sm:$0xf]
        %v300 = vld [vmem:[#allocation5 + $0xa4] sm:$0xf]
        %v301 = vld [vmem:[#allocation5 + $0xc0] sm:$0xf]
        %v302 = vld [vmem:[#allocation5 + $0xdc] sm:$0xf]
        %v303 = vld [vmem:[#allocation5 + $0xf8] sm:$0xf]
        %v304 = vld [vmem:[#allocation5 + $0x114] sm:$0xf]
        %v305 = vld [vmem:[#allocation5 + $0x130] sm:$0xf]
        %v306 = vld [vmem:[#allocation5 + $0x14c] sm:$0xf]
        %v307 = vld [vmem:[#allocation5 + $0x168] sm:$0xf]
        %v308 = vld [vmem:[#allocation5 + $0x184] sm:$0xf]
        %v309 = vld [vmem:[#allocation5 + $0x1a0] sm:$0xf]
        %v310 = vld [vmem:[#allocation5 + $0x1bc] sm:$0xf]
        %v311 = vld [vmem:[%s182] sm:$0xf]
        %v312 = vlaneseq
        %v313 = vshrl.u32 %v312, 7
        %v314 = vsub.s32 0, %v313
        %v315 = vrot.slane %v214, %v314
        %v332 = vunpack.c.l.b16 %v215
        %v333 = vunpack.c.l.b16 %v216
        %v334 = vunpack.c.l.b16 %v217
        %v335 = vunpack.c.l.b16 %v218
        %v336 = vunpack.c.l.b16 %v219
        %v337 = vunpack.c.l.b16 %v220
        %v338 = vunpack.c.l.b16 %v221
        %v339 = vunpack.c.l.b16 %v222
        %v340 = vunpack.c.l.b16 %v223
        %v341 = vunpack.c.l.b16 %v224
        %v342 = vunpack.c.l.b16 %v225
        %v343 = vunpack.c.l.b16 %v226
        %v344 = vunpack.c.l.b16 %v227
        %v345 = vunpack.c.l.b16 %v228
        %v346 = vunpack.c.l.b16 %v229
        %v347 = vunpack.c.l.b16 %v230
        %v348 = vpack.c.b16 %v333, %v332
        %v349 = vpack.c.b16 %v335, %v334
        %v350 = vpack.c.b16 %v337, %v336
        %v351 = vpack.c.b16 %v339, %v338
        %v352 = vpack.c.b16 %v341, %v340
        %v353 = vpack.c.b16 %v343, %v342
        %v354 = vpack.c.b16 %v345, %v344
        %v355 = vpack.c.b16 %v347, %v346
        %364 = vmatprep.subr.bf16.mxu0 0
        %365 = vmatpush1.bf16.msra.mxu0 %v348
        %366 = vmatprep.subr.bf16.mxu0 0
        %367 = vmatpush1.bf16.msra.mxu0 %v349
        %368 = vmatprep.subr.bf16.mxu0 0
        %369 = vmatpush1.bf16.msra.mxu0 %v350
        %370 = vmatprep.subr.bf16.mxu0 0
        %371 = vmatpush1.bf16.msra.mxu0 %v351
        %372 = vmatprep.subr.bf16.mxu0 0
        %373 = vmatpush1.bf16.msra.mxu0 %v352
        %374 = vmatprep.subr.bf16.mxu0 0
        %375 = vmatpush1.bf16.msra.mxu0 %v353
        %376 = vmatprep.subr.bf16.mxu0 0
        %377 = vmatpush1.bf16.msra.mxu0 %v354
        %378 = vmatprep.subr.bf16.mxu0 0
        %379 = vmatpush1.bf16.msra.mxu0 %v355
        %380 = vmatprep.subr.bf16.mxu0 0
        %381 = vmatpush1.bf16.msra.mxu0 0
        %382 = vmatprep.subr.bf16.mxu0 0
        %383 = vmatpush1.bf16.msra.mxu0 0
        %384 = vmatprep.subr.bf16.mxu0 0
        %385 = vmatpush1.bf16.msra.mxu0 0
        %386 = vmatprep.subr.bf16.mxu0 0
        %387 = vmatpush1.bf16.msra.mxu0 0
        %388 = vmatprep.subr.bf16.mxu0 0
        %389 = vmatpush1.bf16.msra.mxu0 0
        %390 = vmatprep.subr.bf16.mxu0 0
        %391 = vmatpush1.bf16.msra.mxu0 0
        %392 = vmatprep.subr.bf16.mxu0 0
        %393 = vmatpush1.bf16.msra.mxu0 0
        %394 = vmatprep.subr.bf16.mxu0 0
        %395 = vmatpush1.bf16.msra.mxu0 0
        %396 = vmatprep.mubr.bf16.mxu0 0
        %397 = vmatmul.mubr.bf16.gmra.mrb[0].mxu0 %v311
        %v398 = vpop.f32.mrb[0].mxu0
        %v399 = vadd.f32 %v315, %v398
        %v400 = vpop.f32.mrb[0].mxu0
        %v401 = vpop.f32.mrb[0].mxu0
        %v402 = vpop.f32.mrb[0].mxu0
        %403 = vdwg.mxu0
        %vm404 = vcmp.ge.f32.partialorder %v399, 0.0
        %v405 = vmul.f32 %v399, 0.01
        %v406 = vsel %vm404, %v399, %v405
        %v407 = vpack.c.bf16 %v406, %v406
        %v440 = vunpack.c.l.b16 %v231
        %v441 = vunpack.c.h.b16 %v231
        %v442 = vunpack.c.l.b16 %v232
        %v443 = vunpack.c.l.b16 %v233
        %v444 = vunpack.c.h.b16 %v233
        %v445 = vunpack.c.l.b16 %v234
        %v446 = vunpack.c.l.b16 %v235
        %v447 = vunpack.c.h.b16 %v235
        %v448 = vunpack.c.l.b16 %v236
        %v449 = vunpack.c.l.b16 %v237
        %v450 = vunpack.c.h.b16 %v237
        %v451 = vunpack.c.l.b16 %v238
        %v452 = vunpack.c.l.b16 %v239
        %v453 = vunpack.c.h.b16 %v239
        %v454 = vunpack.c.l.b16 %v240
        %v455 = vunpack.c.l.b16 %v241
        %v456 = vunpack.c.h.b16 %v241
        %v457 = vunpack.c.l.b16 %v242
        %v458 = vunpack.c.l.b16 %v243
        %v459 = vunpack.c.h.b16 %v243
        %v460 = vunpack.c.l.b16 %v244
        %v461 = vunpack.c.l.b16 %v245
        %v462 = vunpack.c.h.b16 %v245
        %v463 = vunpack.c.l.b16 %v246
        %v464 = vunpack.c.l.b16 %v247
        %v465 = vunpack.c.h.b16 %v247
        %v466 = vunpack.c.l.b16 %v248
        %v467 = vunpack.c.l.b16 %v249
        %v468 = vunpack.c.h.b16 %v249
        %v469 = vunpack.c.l.b16 %v250
        %v470 = vunpack.c.l.b16 %v251
        %v471 = vunpack.c.h.b16 %v251
        %v472 = vunpack.c.l.b16 %v252
        %v473 = vunpack.c.l.b16 %v253
        %v474 = vunpack.c.h.b16 %v253
        %v475 = vunpack.c.l.b16 %v254
        %v476 = vunpack.c.l.b16 %v255
        %v477 = vunpack.c.h.b16 %v255
        %v478 = vunpack.c.l.b16 %v256
        %v479 = vunpack.c.l.b16 %v257
        %v480 = vunpack.c.h.b16 %v257
        %v481 = vunpack.c.l.b16 %v258
        %v482 = vunpack.c.l.b16 %v259
        %v483 = vunpack.c.h.b16 %v259
        %v484 = vunpack.c.l.b16 %v260
        %v485 = vunpack.c.l.b16 %v261
        %v486 = vunpack.c.h.b16 %v261
        %v487 = vunpack.c.l.b16 %v262
        %v488 = vpack.c.b16 %v443, %v440
        %v489 = vpack.c.b16 %v444, %v441
        %v490 = vpack.c.b16 %v445, %v442
        %v491 = vpack.c.b16 %v449, %v446
        %v492 = vpack.c.b16 %v450, %v447
        %v493 = vpack.c.b16 %v451, %v448
        %v494 = vpack.c.b16 %v455, %v452
        %v495 = vpack.c.b16 %v456, %v453
        %v496 = vpack.c.b16 %v457, %v454
        %v497 = vpack.c.b16 %v461, %v458
        %v498 = vpack.c.b16 %v462, %v459
        %v499 = vpack.c.b16 %v463, %v460
        %v500 = vpack.c.b16 %v467, %v464
        %v501 = vpack.c.b16 %v468, %v465
        %v502 = vpack.c.b16 %v469, %v466
        %v503 = vpack.c.b16 %v473, %v470
        %v504 = vpack.c.b16 %v474, %v471
        %v505 = vpack.c.b16 %v475, %v472
        %v506 = vpack.c.b16 %v479, %v476
        %v507 = vpack.c.b16 %v480, %v477
        %v508 = vpack.c.b16 %v481, %v478
        %v509 = vpack.c.b16 %v485, %v482
        %v510 = vpack.c.b16 %v486, %v483
        %v511 = vpack.c.b16 %v487, %v484
        %536 = vmatprep.subr.bf16.mxu0 %v489
        %537 = vmatpush1.bf16.msra.mxu0 %v488
        %538 = vmatprep.subr.bf16.mxu0 %v492
        %539 = vmatpush1.bf16.msra.mxu0 %v491
        %540 = vmatprep.subr.bf16.mxu0 %v495
        %541 = vmatpush1.bf16.msra.mxu0 %v494
        %542 = vmatprep.subr.bf16.mxu0 %v498
        %543 = vmatpush1.bf16.msra.mxu0 %v497
        %544 = vmatprep.subr.bf16.mxu0 %v501
        %545 = vmatpush1.bf16.msra.mxu0 %v500
        %546 = vmatprep.subr.bf16.mxu0 %v504
        %547 = vmatpush1.bf16.msra.mxu0 %v503
        %548 = vmatprep.subr.bf16.mxu0 %v507
        %549 = vmatpush1.bf16.msra.mxu0 %v506
        %550 = vmatprep.subr.bf16.mxu0 %v510
        %551 = vmatpush1.bf16.msra.mxu0 %v509
        %552 = vmatprep.subr.bf16.mxu0 0
        %553 = vmatpush1.bf16.msra.mxu0 0
        %554 = vmatprep.subr.bf16.mxu0 0
        %555 = vmatpush1.bf16.msra.mxu0 0
        %556 = vmatprep.subr.bf16.mxu0 0
        %557 = vmatpush1.bf16.msra.mxu0 0
        %558 = vmatprep.subr.bf16.mxu0 0
        %559 = vmatpush1.bf16.msra.mxu0 0
        %560 = vmatprep.subr.bf16.mxu0 0
        %561 = vmatpush1.bf16.msra.mxu0 0
        %562 = vmatprep.subr.bf16.mxu0 0
        %563 = vmatpush1.bf16.msra.mxu0 0
        %564 = vmatprep.subr.bf16.mxu0 0
        %565 = vmatpush1.bf16.msra.mxu0 0
        %566 = vmatprep.subr.bf16.mxu0 0
        %567 = vmatpush1.bf16.msra.mxu0 0
        %568 = vmatprep.mubr.bf16.mxu0 0
        %569 = vmatmul.mubr.bf16.gmra.mrb[0].mxu0 %v407
        %v570 = vpop.f32.mrb[0].mxu0
        %v571 = vadd.f32 0.0, %v570
        %v572 = vpop.f32.mrb[0].mxu0
        %v573 = vadd.f32 0.0, %v572
        %v574 = vpop.f32.mrb[0].mxu0
        %v575 = vpop.f32.mrb[0].mxu0
        %576 = vdwg.mxu0
        %577 = vmatprep.subr.bf16.mxu0 0
        %578 = vmatpush1.bf16.msra.mxu0 %v490
        %579 = vmatprep.subr.bf16.mxu0 0
        %580 = vmatpush1.bf16.msra.mxu0 %v493
        %581 = vmatprep.subr.bf16.mxu0 0
        %582 = vmatpush1.bf16.msra.mxu0 %v496
        %583 = vmatprep.subr.bf16.mxu0 0
        %584 = vmatpush1.bf16.msra.mxu0 %v499
        %585 = vmatprep.subr.bf16.mxu0 0
        %586 = vmatpush1.bf16.msra.mxu0 %v502
        %587 = vmatprep.subr.bf16.mxu0 0
        %588 = vmatpush1.bf16.msra.mxu0 %v505
        %589 = vmatprep.subr.bf16.mxu0 0
        %590 = vmatpush1.bf16.msra.mxu0 %v508
        %591 = vmatprep.subr.bf16.mxu0 0
        %592 = vmatpush1.bf16.msra.mxu0 %v511
        %593 = vmatprep.subr.bf16.mxu0 0
        %594 = vmatpush1.bf16.msra.mxu0 0
        %595 = vmatprep.subr.bf16.mxu0 0
        %596 = vmatpush1.bf16.msra.mxu0 0
        %597 = vmatprep.subr.bf16.mxu0 0
        %598 = vmatpush1.bf16.msra.mxu0 0
        %599 = vmatprep.subr.bf16.mxu0 0
        %600 = vmatpush1.bf16.msra.mxu0 0
        %601 = vmatprep.subr.bf16.mxu0 0
        %602 = vmatpush1.bf16.msra.mxu0 0
        %603 = vmatprep.subr.bf16.mxu0 0
        %604 = vmatpush1.bf16.msra.mxu0 0
        %605 = vmatprep.subr.bf16.mxu0 0
        %606 = vmatpush1.bf16.msra.mxu0 0
        %607 = vmatprep.subr.bf16.mxu0 0
        %608 = vmatpush1.bf16.msra.mxu0 0
        %609 = vmatprep.mubr.bf16.mxu0 0
        %610 = vmatmul.mubr.bf16.gmra.mrb[0].mxu0 %v407
        %v611 = vpop.f32.mrb[0].mxu0
        %v612 = vadd.f32 0.0, %v611
        %v613 = vpop.f32.mrb[0].mxu0
        %v614 = vpop.f32.mrb[0].mxu0
        %v615 = vpop.f32.mrb[0].mxu0
        %616 = vdwg.mxu0
        %v617 = vmax.f32 %v571, %v573
        %v618 = vmax.f32 %v617, %v612
        %v619 = vrot.slane %v618, 4
        %v620 = vadd.f32 %v618, %v619
        %v621 = vrot.slane %v620, 2
        %v622 = vadd.f32 %v620, %v621
        %v623 = vrot.slane %v622, 1
        %v624 = vadd.f32 %v622, %v623
        %v625 = vrcp.pop 8.0
        %v626 = vmul.f32 %v624, %v625
        %v627 = vmul.f32 %v618, %v618
        %v628 = vrot.slane %v627, 4
        %v629 = vadd.f32 %v627, %v628
        %v630 = vrot.slane %v629, 2
        %v631 = vadd.f32 %v629, %v630
        %v632 = vrot.slane %v631, 1
        %v633 = vadd.f32 %v631, %v632
        %v634 = vmul.f32 %v633, %v625
        %v635 = vmul.f32 %v626, %v626
        %v636 = vsub.f32 %v634, %v635
        %v637 = vmax.f32 %v636, 0.0
        %v638 = vsub.f32 %v618, %v626
        %v639 = vlaneseq
        %v640 = vshrl.u32 %v639, 7
        %v641 = vsub.s32 4, %v640
        %v642 = vrot.slane %v214, %v641
        %v643 = vmul.f32 %v642, %v638
        %v644 = vadd.f32 %v637, 1e-05
        %v645 = vrsqrt.pop %v644
        %v646 = vmul.f32 %v643, %v645
        %v647 = vlaneseq
        %v648 = vshrl.u32 %v647, 7
        %v649 = vsub.s32 5, %v648
        %v650 = vrot.slane %v214, %v649
        %v651 = vadd.f32 %v646, %v650
        %v652 = vpack.c.bf16 %v651, %v651
        %v653 = vlaneseq
        %v654 = vshrl.u32 %v653, 7
        %v655 = vsub.s32 1, %v654
        %v656 = vrot.slane %v214, %v655
        %v673 = vunpack.c.l.b16 %v263
        %v674 = vunpack.c.l.b16 %v264
        %v675 = vunpack.c.l.b16 %v265
        %v676 = vunpack.c.l.b16 %v266
        %v677 = vunpack.c.l.b16 %v267
        %v678 = vunpack.c.l.b16 %v268
        %v679 = vunpack.c.l.b16 %v269
        %v680 = vunpack.c.l.b16 %v270
        %v681 = vunpack.c.l.b16 %v271
        %v682 = vunpack.c.l.b16 %v272
        %v683 = vunpack.c.l.b16 %v273
        %v684 = vunpack.c.l.b16 %v274
        %v685 = vunpack.c.l.b16 %v275
        %v686 = vunpack.c.l.b16 %v276
        %v687 = vunpack.c.l.b16 %v277
        %v688 = vunpack.c.l.b16 %v278
        %v689 = vpack.c.b16 %v674, %v673
        %v690 = vpack.c.b16 %v676, %v675
        %v691 = vpack.c.b16 %v678, %v677
        %v692 = vpack.c.b16 %v680, %v679
        %v693 = vpack.c.b16 %v682, %v681
        %v694 = vpack.c.b16 %v684, %v683
        %v695 = vpack.c.b16 %v686, %v685
        %v696 = vpack.c.b16 %v688, %v687
        %705 = vmatprep.subr.bf16.mxu0 0
        %706 = vmatpush1.bf16.msra.mxu0 %v689
        %707 = vmatprep.subr.bf16.mxu0 0
        %708 = vmatpush1.bf16.msra.mxu0 %v690
        %709 = vmatprep.subr.bf16.mxu0 0
        %710 = vmatpush1.bf16.msra.mxu0 %v691
        %711 = vmatprep.subr.bf16.mxu0 0
        %712 = vmatpush1.bf16.msra.mxu0 %v692
        %713 = vmatprep.subr.bf16.mxu0 0
        %714 = vmatpush1.bf16.msra.mxu0 %v693
        %715 = vmatprep.subr.bf16.mxu0 0
        %716 = vmatpush1.bf16.msra.mxu0 %v694
        %717 = vmatprep.subr.bf16.mxu0 0
        %718 = vmatpush1.bf16.msra.mxu0 %v695
        %719 = vmatprep.subr.bf16.mxu0 0
        %720 = vmatpush1.bf16.msra.mxu0 %v696
        %721 = vmatprep.subr.bf16.mxu0 0
        %722 = vmatpush1.bf16.msra.mxu0 0
        %723 = vmatprep.subr.bf16.mxu0 0
        %724 = vmatpush1.bf16.msra.mxu0 0
        %725 = vmatprep.subr.bf16.mxu0 0
        %726 = vmatpush1.bf16.msra.mxu0 0
        %727 = vmatprep.subr.bf16.mxu0 0
        %728 = vmatpush1.bf16.msra.mxu0 0
        %729 = vmatprep.subr.bf16.mxu0 0
        %730 = vmatpush1.bf16.msra.mxu0 0
        %731 = vmatprep.subr.bf16.mxu0 0
        %732 = vmatpush1.bf16.msra.mxu0 0
        %733 = vmatprep.subr.bf16.mxu0 0
        %734 = vmatpush1.bf16.msra.mxu0 0
        %735 = vmatprep.subr.bf16.mxu0 0
        %736 = vmatpush1.bf16.msra.mxu0 0
        %737 = vmatprep.mubr.bf16.mxu0 0
        %738 = vmatmul.mubr.bf16.gmra.mrb[0].mxu0 %v652
        %v739 = vpop.f32.mrb[0].mxu0
        %v740 = vadd.f32 %v656, %v739
        %v741 = vpop.f32.mrb[0].mxu0
        %v742 = vpop.f32.mrb[0].mxu0
        %v743 = vpop.f32.mrb[0].mxu0
        %744 = vdwg.mxu0
        %vm745 = vcmp.ge.f32.partialorder %v740, 0.0
        %v746 = vmul.f32 %v740, 0.01
        %v747 = vsel %vm745, %v740, %v746
        %v748 = vpack.c.bf16 %v747, %v747
        %v749 = vlaneseq
        %v750 = vshrl.u32 %v749, 7
        %v751 = vsub.s32 2, %v750
        %v752 = vrot.slane %v214, %v751
        %v769 = vunpack.c.l.b16 %v279
        %v770 = vunpack.c.l.b16 %v280
        %v771 = vunpack.c.l.b16 %v281
        %v772 = vunpack.c.l.b16 %v282
        %v773 = vunpack.c.l.b16 %v283
        %v774 = vunpack.c.l.b16 %v284
        %v775 = vunpack.c.l.b16 %v285
        %v776 = vunpack.c.l.b16 %v286
        %v777 = vunpack.c.l.b16 %v287
        %v778 = vunpack.c.l.b16 %v288
        %v779 = vunpack.c.l.b16 %v289
        %v780 = vunpack.c.l.b16 %v290
        %v781 = vunpack.c.l.b16 %v291
        %v782 = vunpack.c.l.b16 %v292
        %v783 = vunpack.c.l.b16 %v293
        %v784 = vunpack.c.l.b16 %v294
        %v785 = vpack.c.b16 %v770, %v769
        %v786 = vpack.c.b16 %v772, %v771
        %v787 = vpack.c.b16 %v774, %v773
        %v788 = vpack.c.b16 %v776, %v775
        %v789 = vpack.c.b16 %v778, %v777
        %v790 = vpack.c.b16 %v780, %v779
        %v791 = vpack.c.b16 %v782, %v781
        %v792 = vpack.c.b16 %v784, %v783
        %801 = vmatprep.subr.bf16.mxu0 0
        %802 = vmatpush1.bf16.msra.mxu0 %v785
        %803 = vmatprep.subr.bf16.mxu0 0
        %804 = vmatpush1.bf16.msra.mxu0 %v786
        %805 = vmatprep.subr.bf16.mxu0 0
        %806 = vmatpush1.bf16.msra.mxu0 %v787
        %807 = vmatprep.subr.bf16.mxu0 0
        %808 = vmatpush1.bf16.msra.mxu0 %v788
        %809 = vmatprep.subr.bf16.mxu0 0
        %810 = vmatpush1.bf16.msra.mxu0 %v789
        %811 = vmatprep.subr.bf16.mxu0 0
        %812 = vmatpush1.bf16.msra.mxu0 %v790
        %813 = vmatprep.subr.bf16.mxu0 0
        %814 = vmatpush1.bf16.msra.mxu0 %v791
        %815 = vmatprep.subr.bf16.mxu0 0
        %816 = vmatpush1.bf16.msra.mxu0 %v792
        %817 = vmatprep.subr.bf16.mxu0 0
        %818 = vmatpush1.bf16.msra.mxu0 0
        %819 = vmatprep.subr.bf16.mxu0 0
        %820 = vmatpush1.bf16.msra.mxu0 0
        %821 = vmatprep.subr.bf16.mxu0 0
        %822 = vmatpush1.bf16.msra.mxu0 0
        %823 = vmatprep.subr.bf16.mxu0 0
        %824 = vmatpush1.bf16.msra.mxu0 0
        %825 = vmatprep.subr.bf16.mxu0 0
        %826 = vmatpush1.bf16.msra.mxu0 0
        %827 = vmatprep.subr.bf16.mxu0 0
        %828 = vmatpush1.bf16.msra.mxu0 0
        %829 = vmatprep.subr.bf16.mxu0 0
        %830 = vmatpush1.bf16.msra.mxu0 0
        %831 = vmatprep.subr.bf16.mxu0 0
        %832 = vmatpush1.bf16.msra.mxu0 0
        %833 = vmatprep.mubr.bf16.mxu0 0
        %834 = vmatmul.mubr.bf16.gmra.mrb[0].mxu0 %v748
        %v835 = vpop.f32.mrb[0].mxu0
        %v836 = vadd.f32 %v752, %v835
        %v837 = vpop.f32.mrb[0].mxu0
        %v838 = vpop.f32.mrb[0].mxu0
        %v839 = vpop.f32.mrb[0].mxu0
        %840 = vdwg.mxu0
        %v841 = vrot.slane %v836, 4
        %v842 = vadd.f32 %v836, %v841
        %v843 = vrot.slane %v842, 2
        %v844 = vadd.f32 %v842, %v843
        %v845 = vrot.slane %v844, 1
        %v846 = vadd.f32 %v844, %v845
        %v847 = vmul.f32 %v846, %v625
        %v848 = vmul.f32 %v836, %v836
        %v849 = vrot.slane %v848, 4
        %v850 = vadd.f32 %v848, %v849
        %v851 = vrot.slane %v850, 2
        %v852 = vadd.f32 %v850, %v851
        %v853 = vrot.slane %v852, 1
        %v854 = vadd.f32 %v852, %v853
        %v855 = vmul.f32 %v854, %v625
        %v856 = vmul.f32 %v847, %v847
        %v857 = vsub.f32 %v855, %v856
        %v858 = vmax.f32 %v857, 0.0
        %v859 = vsub.f32 %v836, %v847
        %v860 = vlaneseq
        %v861 = vshrl.u32 %v860, 7
        %v862 = vsub.s32 6, %v861
        %v863 = vrot.slane %v214, %v862
        %v864 = vmul.f32 %v863, %v859
        %v865 = vadd.f32 %v858, 1e-05
        %v866 = vrsqrt.pop %v865
        %v867 = vmul.f32 %v864, %v866
        %v868 = vlaneseq
        %v869 = vshrl.u32 %v868, 7
        %v870 = vsub.s32 7, %v869
        %v871 = vrot.slane %v214, %v870
        %v872 = vadd.f32 %v867, %v871
        %vm873 = vcmp.ge.f32.partialorder %v872, 0.0
        %v874 = vmul.f32 %v872, 0.01
        %v875 = vsel %vm873, %v872, %v874
        %v876 = vpack.c.bf16 %v875, %v875
        %v877 = vlaneseq
        %v878 = vshrl.u32 %v877, 7
        %v879 = vsub.s32 3, %v878
        %v880 = vrot.slane %v214, %v879
        %v897 = vunpack.c.l.b16 %v295
        %v898 = vunpack.c.l.b16 %v296
        %v899 = vunpack.c.l.b16 %v297
        %v900 = vunpack.c.l.b16 %v298
        %v901 = vunpack.c.l.b16 %v299
        %v902 = vunpack.c.l.b16 %v300
        %v903 = vunpack.c.l.b16 %v301
        %v904 = vunpack.c.l.b16 %v302
        %v905 = vunpack.c.l.b16 %v303
        %v906 = vunpack.c.l.b16 %v304
        %v907 = vunpack.c.l.b16 %v305
        %v908 = vunpack.c.l.b16 %v306
        %v909 = vunpack.c.l.b16 %v307
        %v910 = vunpack.c.l.b16 %v308
        %v911 = vunpack.c.l.b16 %v309
        %v912 = vunpack.c.l.b16 %v310
        %v913 = vpack.c.b16 %v898, %v897
        %v914 = vpack.c.b16 %v900, %v899
        %v915 = vpack.c.b16 %v902, %v901
        %v916 = vpack.c.b16 %v904, %v903
        %v917 = vpack.c.b16 %v906, %v905
        %v918 = vpack.c.b16 %v908, %v907
        %v919 = vpack.c.b16 %v910, %v909
        %v920 = vpack.c.b16 %v912, %v911
        %929 = vmatprep.subr.bf16.mxu0 0
        %930 = vmatpush1.bf16.msra.mxu0 %v913
        %931 = vmatprep.subr.bf16.mxu0 0
        %932 = vmatpush1.bf16.msra.mxu0 %v914
        %933 = vmatprep.subr.bf16.mxu0 0
        %934 = vmatpush1.bf16.msra.mxu0 %v915
        %935 = vmatprep.subr.bf16.mxu0 0
        %936 = vmatpush1.bf16.msra.mxu0 %v916
        %937 = vmatprep.subr.bf16.mxu0 0
        %938 = vmatpush1.bf16.msra.mxu0 %v917
        %939 = vmatprep.subr.bf16.mxu0 0
        %940 = vmatpush1.bf16.msra.mxu0 %v918
        %941 = vmatprep.subr.bf16.mxu0 0
        %942 = vmatpush1.bf16.msra.mxu0 %v919
        %943 = vmatprep.subr.bf16.mxu0 0
        %944 = vmatpush1.bf16.msra.mxu0 %v920
        %945 = vmatprep.subr.bf16.mxu0 0
        %946 = vmatpush1.bf16.msra.mxu0 0
        %947 = vmatprep.subr.bf16.mxu0 0
        %948 = vmatpush1.bf16.msra.mxu0 0
        %949 = vmatprep.subr.bf16.mxu0 0
        %950 = vmatpush1.bf16.msra.mxu0 0
        %951 = vmatprep.subr.bf16.mxu0 0
        %952 = vmatpush1.bf16.msra.mxu0 0
        %953 = vmatprep.subr.bf16.mxu0 0
        %954 = vmatpush1.bf16.msra.mxu0 0
        %955 = vmatprep.subr.bf16.mxu0 0
        %956 = vmatpush1.bf16.msra.mxu0 0
        %957 = vmatprep.subr.bf16.mxu0 0
        %958 = vmatpush1.bf16.msra.mxu0 0
        %959 = vmatprep.subr.bf16.mxu0 0
        %960 = vmatpush1.bf16.msra.mxu0 0
        %961 = vmatprep.mubr.bf16.mxu0 0
        %962 = vmatmul.mubr.bf16.gmra.mrb[0].mxu0 %v876
        %v963 = vpop.f32.mrb[0].mxu0
        %v964 = vadd.f32 %v880, %v963
        %v965 = vpop.f32.mrb[0].mxu0
        %v966 = vpop.f32.mrb[0].mxu0
        %v967 = vpop.f32.mrb[0].mxu0
        %968 = vdwg.mxu0
        %vm969 = vcmp.ge.f32.partialorder %v964, 0.0
        %v970 = vmul.f32 %v964, 0.1
        %v971 = vsel %vm969, %v964, %v970
        %972 = vst [vmem:[%s212] sm:$0xff] %v971
        %s973 = sand.u32 %s97, 1
        %s974 = scalar_lea.sflag [#allocation4], %s973
        %s975 = sand.u32 %s97, 1
        %s976 = smul.addr %s975, 8
        %s977 = scalar_lea.vmem [#allocation8], %s976
        // Predicated region
        $region45: #{tpu_custom_call.1} parent=31 // pred_check
          %p978 = pneg %p107
        $region46: #{tpu_custom_call.1} parent=31 // pred_check_branch
          %980 = sbr.rel (%p978) target = $region48
        $region47: #{tpu_custom_call.1} parent=31 // pred_region
          %s982 = ssub.s32 128, 128
          %983 = vsyncadd %s974, %s982
          %s984 = smul.addr %s21, 128
          %s985 = scalar_lea.hbm %s3, %s984
          %s987 = sshll.u32 %s977, 4
          %s988 = int_to_ptr.vmem [resolvable:$true] %s987
          %990 = dma.vmem_to_hbm [thread:$0]  %s988, 128, %s985, %s974
        $region48: #{tpu_custom_call.1} parent=31 // pred_fallthru
          _
      $region32: #{tpu_custom_call.1} parent=5 // pred_fallthru
        _
      %p991 = scmp.le.s32.totalorder 2, %s16
      // Predicated region
      $region49: #{tpu_custom_call.1} parent=5 // pred_check
        %p992 = pneg %p991
      $region50: #{tpu_custom_call.1} parent=5 // pred_check_branch
        %994 = sbr.rel (%p992) target = $region52
      $region51: #{tpu_custom_call.1} parent=5 // pred_region
        %s995 = ssub.s32 %s16, 2
        // Predicated region
        $region53: #{tpu_custom_call.1} parent=51 // pred_check
          %p996 = pneg %p113
        $region54: #{tpu_custom_call.1} parent=51 // pred_check_branch
          %998 = sbr.rel (%p996) target = $region56
        $region55: #{tpu_custom_call.1} parent=51 // pred_region
          %s999 = sand.u32 %s98, 1
          %s1000 = scalar_lea.sflag [#allocation4], %s999
          %s1001 = sand.u32 %s98, 1
          %s1002 = smul.addr %s1001, 8
          %s1003 = scalar_lea.vmem [#allocation8], %s1002
          %1004 = dma.done %s1000, 128
        $region56: #{tpu_custom_call.1} parent=51 // pred_fallthru
          _
      $region52: #{tpu_custom_call.1} parent=5 // pred_fallthru
        _
    $region6: #{tpu_custom_call.1} parent=1 // loop_footer
      %s20 = sadd.s32 1, %s16
    $region7: #{tpu_custom_call.1} parent=1 // loop_footer_branch
      %15 = sbr.rel target = $region3
    $region8: #{tpu_custom_call.1} parent=1 // loop_exit
      _
    %1005 = vsyncpa [#allocation3], 1
    %s1006 = scalar_lea.sflag [#allocation3], 1
    %1007 = vsyncpa %s1006, 1
    %1008 = vsyncpa [#allocation6], 1
    %1009 = vsyncpa [#allocation4], 1
    %s1010 = scalar_lea.sflag [#allocation4], 1
    %1011 = vsyncpa %s1010, 1

</llo_original>
